<compile_context>
chip_gen: v7x
topology: tpu7x:2x2x1
jax: 0.10.0
libtpu: 0.0.40
codegen_flags: <defaults>
</compile_context>

<pallas_src>
import functools

import jax
import jax.numpy as jnp
import numpy as np
from jax import lax
from jax.experimental import pallas as pl
from jax.experimental.pallas import tpu as pltpu

_MIN_TB = 8     # sublane granularity for the batch tile
_LANE = 128     # lane width


def _round_up(x, m):
    return ((x + m - 1) // m) * m


def _critic_kernel(s_ref, a_ref, w1s_ref, w1a_ref, b1_ref, w2_ref, b2_ref,
                   w3_ref, b3_ref, out_ref, *, num_atoms, apply_softmax):
    # s_ref:   (TB, Ks)        a_ref:   (TB, Ka)
    # w1s_ref: (Ks, Hp)        w1a_ref: (Ka, Hp)       b1_ref: (1, Hp)
    # w2_ref:  (Hp, Hp)        b2_ref:  (1, Hp)
    # w3_ref:  (Hp, Ap)        b3_ref:  (1, Ap)        out_ref: (TB, Ap)

    # Layer 1 — fused concat: [state, action] @ W1 == state@W1_s + action@W1_a
    h = jnp.dot(s_ref[...], w1s_ref[...], preferred_element_type=jnp.float32)
    h = h + jnp.dot(a_ref[...], w1a_ref[...],
                    preferred_element_type=jnp.float32)
    h = jnp.maximum(h + b1_ref[...], 0.0)

    # Layer 2
    h = jnp.dot(h, w2_ref[...], preferred_element_type=jnp.float32)
    h = jnp.maximum(h + b2_ref[...], 0.0)

    # Layer 3
    logits = jnp.dot(h, w3_ref[...],
                     preferred_element_type=jnp.float32) + b3_ref[...]

    if apply_softmax:
        # Fused softmax over atoms. Padded atom lanes MUST be -inf (not 0)
        # so exp() contributes 0 to the denominator.
        if num_atoms != logits.shape[-1]:
            lane = lax.broadcasted_iota(jnp.int32, logits.shape, 1)
            logits = jnp.where(lane < num_atoms, logits, -jnp.inf)
        m = jnp.max(logits, axis=-1, keepdims=True)
        e = jnp.exp(logits - m)                      # EUP slot, ~free
        out_ref[...] = (e / jnp.sum(e, axis=-1, keepdims=True)
                        ).astype(out_ref.dtype)
    else:
        out_ref[...] = logits.astype(out_ref.dtype)


def _resident_spec(shape):
    """Weights: constant block index -> VMEM-resident across the batch grid.
    Single-buffer them (never re-fetched) so weight VMEM does not double."""
    try:
        return pl.BlockSpec(shape, lambda i: (0, 0),
                            pipeline_mode=pl.Buffered(1))
    except (AttributeError, TypeError):   # API without pipeline_mode/Buffered
        return pl.BlockSpec(shape, lambda i: (0, 0))


@functools.partial(jax.jit,
                   static_argnames=("num_atoms", "block_batch",
                                    "apply_softmax"))
def _critic_pallas(state, action, params, num_atoms, block_batch=1024,
                   apply_softmax=False):
    B, num_states = state.shape
    num_actions = action.shape[1]
    Ks, Hp = params["w1_s"].shape        # padded state dim, padded hidden
    Ka = params["w1_a"].shape[0]         # padded action dim
    Ap = params["w3"].shape[1]           # padded num_atoms

    # ---- balanced batch tiling -------------------------------------------
    nb = max(1, pl.cdiv(B, block_batch))
    # Give the second TensorCore (v7x megacore) work once the batch supports
    # two >= 128-row tiles.
    if nb == 1 and B >= 2 * _LANE:
        nb = 2
    TB = _round_up(pl.cdiv(B, nb), _MIN_TB)
    Bp = TB * nb                          # Bp - B < 8 * nb  (small pad only)

    # ---- pad batch rows (few) and K columns to sublane multiples ----------
    if Bp != B or Ks != num_states:
        state = jnp.pad(state, ((0, Bp - B), (0, Ks - num_states)))
    if Bp != B or Ka != num_actions:
        action = jnp.pad(action, ((0, Bp - B), (0, Ka - num_actions)))

    batch_spec = lambda f: pl.BlockSpec((TB, f), lambda i: (i, 0))

    weight_elems = Ks * Hp + Ka * Hp + Hp * Hp + Hp * Ap + 2 * Hp + Ap
    cost = pl.CostEstimate(
        flops=2 * Bp * (Ks * Hp + Ka * Hp + Hp * Hp + Hp * Ap),
        transcendentals=Bp * Ap if apply_softmax else 0,
        bytes_accessed=4 * (Bp * (Ks + Ka + Ap) + weight_elems),
    )

    # VMEM: single-buffered weights + double-buffered streamed tiles + slack.
    vmem_need = 4 * weight_elems + 2 * 4 * TB * (Ks + Ka + Ap)
    vmem_limit = min(max(int(1.25 * vmem_need) + (2 << 20), 32 << 20),
                     64 << 20)

    kernel = functools.partial(_critic_kernel, num_atoms=num_atoms,
                               apply_softmax=apply_softmax)

    out = pl.pallas_call(
        kernel,
        out_shape=jax.ShapeDtypeStruct((Bp, Ap), jnp.float32),
        grid=(nb,),
        in_specs=[
            batch_spec(Ks),                       # state tile
            batch_spec(Ka),                       # action tile
            _resident_spec(params["w1_s"].shape),
            _resident_spec(params["w1_a"].shape),
            _resident_spec(params["b1"].shape),
            _resident_spec(params["w2"].shape),
            _resident_spec(params["b2"].shape),
            _resident_spec(params["w3"].shape),
            _resident_spec(params["b3"].shape),
        ],
        out_specs=pl.BlockSpec((TB, Ap), lambda i: (i, 0)),
        compiler_params=pltpu.CompilerParams(
            dimension_semantics=("parallel",),
            vmem_limit_bytes=vmem_limit),
        cost_estimate=cost,
    )(state, action, params["w1_s"], params["w1_a"], params["b1"],
      params["w2"], params["b2"], params["w3"], params["b3"])

    return out[:B, :num_atoms]


def critic_forward(state, action, params, num_atoms, block_batch=1024):
    """Pallas-backed Critic.forward(state, action) -> (B, num_atoms) logits."""
    return _critic_pallas(state, action, params, num_atoms=num_atoms,
                          block_batch=block_batch, apply_softmax=False)


def critic_get_probs(state, action, params, num_atoms, block_batch=1024):
    """Critic.get_probs: softmax over atoms, fused into the kernel."""
    return _critic_pallas(state, action, params, num_atoms=num_atoms,
                          block_batch=block_batch, apply_softmax=True)


def init_raw_params(key, num_states, num_actions, hidden_size, num_atoms):
    """Deterministic synthetic init matching nn.Linear (W is (out, in))."""
    d_in = num_states + num_actions
    keys = jax.random.split(key, 6)

    def linear(kw, kb, fan_in, fan_out):
        bound = 1.0 / np.sqrt(fan_in)
        w = jax.random.uniform(kw, (fan_out, fan_in), jnp.float32,
                               minval=-bound, maxval=bound)
        b = jax.random.uniform(kb, (fan_out,), jnp.float32,
                               minval=-bound, maxval=bound)
        return w, b

    w1, b1 = linear(keys[0], keys[1], d_in, hidden_size)
    w2, b2 = linear(keys[2], keys[3], hidden_size, hidden_size)
    w3, b3 = linear(keys[4], keys[5], hidden_size, num_atoms)
    return {"w1": w1, "b1": b1, "w2": w2, "b2": b2, "w3": w3, "b3": b3}


def prepare_kernel_params(raw, num_states, num_actions, hidden_size,
                          num_atoms):
    """Transpose to (in, out), split W1 for the fused concat, zero-pad:
    hidden/atoms -> multiple of 128 (lanes), state/action K -> multiple of 8
    (sublanes). Padded bias entries are zero, so ReLU(0)=0 keeps padded
    hidden lanes exactly zero."""
    Hp = _round_up(hidden_size, _LANE)
    Ap = _round_up(num_atoms, _LANE)
    Ks = _round_up(num_states, _MIN_TB)
    Ka = _round_up(num_actions, _MIN_TB)
    ph = Hp - hidden_size
    pa = Ap - num_atoms

    w1t = raw["w1"].T                      # (d_in, hidden)
    w1_s = w1t[:num_states]                # (num_states, hidden)
    w1_a = w1t[num_states:]                # (num_actions, hidden)

    return {
        "w1_s": jnp.pad(w1_s, ((0, Ks - num_states), (0, ph))),
        "w1_a": jnp.pad(w1_a, ((0, Ka - num_actions), (0, ph))),
        "b1": jnp.pad(raw["b1"].reshape(1, -1), ((0, 0), (0, ph))),
        "w2": jnp.pad(raw["w2"].T, ((0, ph), (0, ph))),
        "b2": jnp.pad(raw["b2"].reshape(1, -1), ((0, 0), (0, ph))),
        "w3": jnp.pad(raw["w3"].T, ((0, ph), (0, pa))),
        "b3": jnp.pad(raw["b3"].reshape(1, -1), ((0, 0), (0, pa))),
    }


def reference_forward(state, action, raw):
    x = jnp.concatenate([state, action], axis=1)
    h1 = jnp.maximum(x @ raw["w1"].T + raw["b1"], 0.0)
    h2 = jnp.maximum(h1 @ raw["w2"].T + raw["b2"], 0.0)
    return h2 @ raw["w3"].T + raw["b3"]


if __name__ == "__main__":
    # Small, module-consistent shapes.
    batch = 2
    num_states = 16
    num_actions = 4
    hidden_size = 32
    num_atoms = 51
    v_min, v_max = -10.0, 10.0

    key = jax.random.PRNGKey(0)
    k_params, k_state, k_action, k_state2, k_action2 = jax.random.split(key, 5)

    raw = init_raw_params(k_params, num_states, num_actions, hidden_size,
                          num_atoms)
    kparams = prepare_kernel_params(raw, num_states, num_actions, hidden_size,
                                    num_atoms)
    # z_atoms is a constant support vector (not used in forward); for parity.
    z_atoms = jnp.linspace(v_min, v_max, num_atoms)

    state = jax.random.normal(k_state, (batch, num_states), jnp.float32)
    action = jax.random.normal(k_action, (batch, num_actions), jnp.float32)

    # forward (logits)
    out = jax.block_until_ready(
        critic_forward(state, action, kparams, num_atoms=num_atoms))
    ref = reference_forward(state, action, raw)
    np.testing.assert_allclose(np.asarray(out), np.asarray(ref),
                               rtol=1e-5, atol=1e-5)

    # get_probs (softmax fused in-kernel, padded atom lanes masked)
    probs = jax.block_until_ready(
        critic_get_probs(state, action, kparams, num_atoms=num_atoms))
    ref_probs = jax.nn.softmax(ref, axis=1)
    np.testing.assert_allclose(np.asarray(probs), np.asarray(ref_probs),
                               rtol=1e-4, atol=1e-5)
    np.testing.assert_allclose(np.asarray(probs.sum(axis=1)),
                               np.ones(batch), rtol=1e-4, atol=1e-5)

    # Exercise the balanced multi-tile path (nb=2, small row pad only).
    big_b = 300
    state2 = jax.random.normal(k_state2, (big_b, num_states), jnp.float32)
    action2 = jax.random.normal(k_action2, (big_b, num_actions), jnp.float32)
    out2 = jax.block_until_ready(
        critic_forward(state2, action2, kparams, num_atoms=num_atoms))
    ref2 = reference_forward(state2, action2, raw)
    np.testing.assert_allclose(np.asarray(out2), np.asarray(ref2),
                               rtol=1e-5, atol=1e-5)

    print("KERNEL_OK")
</pallas_src>

<mosaic_0001>
module attributes {stable_mosaic.version = 11 : i64} {
  func.func @_critic_kernel(%arg0: i32, %arg1: memref<8x16xf32, #tpu.memory_space<vmem>>, %arg2: memref<8x8xf32, #tpu.memory_space<vmem>>, %arg3: memref<16x128xf32, #tpu.memory_space<vmem>>, %arg4: memref<8x128xf32, #tpu.memory_space<vmem>>, %arg5: memref<1x128xf32, #tpu.memory_space<vmem>>, %arg6: memref<128x128xf32, #tpu.memory_space<vmem>>, %arg7: memref<1x128xf32, #tpu.memory_space<vmem>>, %arg8: memref<128x128xf32, #tpu.memory_space<vmem>>, %arg9: memref<1x128xf32, #tpu.memory_space<vmem>>, %arg10: memref<8x128xf32, #tpu.memory_space<vmem>>) attributes {dimension_semantics = [#tpu.dimension_semantics<parallel>], iteration_bounds = array<i64: 1>, scalar_prefetch = 0 : i64, scratch_operands = 0 : i64, tpu.core_type = #tpu.core_type<tc>, window_params = [{transform_indices = @transform_0, window_bounds = array<i64: 8, 16>}, {transform_indices = @transform_1, window_bounds = array<i64: 8, 8>}, {pipeline_mode = #tpu.pipeline_mode<synchronous>, transform_indices = @transform_2, window_bounds = array<i64: 16, 128>}, {pipeline_mode = #tpu.pipeline_mode<synchronous>, transform_indices = @transform_3, window_bounds = array<i64: 8, 128>}, {pipeline_mode = #tpu.pipeline_mode<synchronous>, transform_indices = @transform_4, window_bounds = array<i64: 1, 128>}, {pipeline_mode = #tpu.pipeline_mode<synchronous>, transform_indices = @transform_5, window_bounds = array<i64: 128, 128>}, {pipeline_mode = #tpu.pipeline_mode<synchronous>, transform_indices = @transform_6, window_bounds = array<i64: 1, 128>}, {pipeline_mode = #tpu.pipeline_mode<synchronous>, transform_indices = @transform_7, window_bounds = array<i64: 128, 128>}, {pipeline_mode = #tpu.pipeline_mode<synchronous>, transform_indices = @transform_8, window_bounds = array<i64: 1, 128>}, {transform_indices = @transform_9, window_bounds = array<i64: 8, 128>}]} {
    %c0 = arith.constant 0 : index
    %c0_0 = arith.constant 0 : index
    %0 = vector.load %arg1[%c0, %c0_0] : memref<8x16xf32, #tpu.memory_space<vmem>>, vector<8x16xf32>
    %c0_1 = arith.constant 0 : index
    %c0_2 = arith.constant 0 : index
    %1 = vector.load %arg3[%c0_1, %c0_2] : memref<16x128xf32, #tpu.memory_space<vmem>>, vector<16x128xf32>
    %cst = arith.constant dense<0.000000e+00> : vector<8x128xf32>
    %2 = tpu.matmul %0, %1, %cst {dimension_numbers = #tpu.dot_dimension_numbers<[1], [0], [0], [1], [0, 0, 1, 1], [], []>} : vector<8x16xf32>, vector<16x128xf32>, vector<8x128xf32> -> vector<8x128xf32>
    %c0_3 = arith.constant 0 : index
    %c0_4 = arith.constant 0 : index
    %3 = vector.load %arg2[%c0_3, %c0_4] : memref<8x8xf32, #tpu.memory_space<vmem>>, vector<8x8xf32>
    %c0_5 = arith.constant 0 : index
    %c0_6 = arith.constant 0 : index
    %4 = vector.load %arg4[%c0_5, %c0_6] : memref<8x128xf32, #tpu.memory_space<vmem>>, vector<8x128xf32>
    %cst_7 = arith.constant dense<0.000000e+00> : vector<8x128xf32>
    %5 = tpu.matmul %3, %4, %cst_7 {dimension_numbers = #tpu.dot_dimension_numbers<[1], [0], [0], [1], [0, 0, 1, 1], [], []>} : vector<8x8xf32>, vector<8x128xf32>, vector<8x128xf32> -> vector<8x128xf32>
    %6 = arith.addf %2, %5 : vector<8x128xf32>
    %c0_8 = arith.constant 0 : index
    %c0_9 = arith.constant 0 : index
    %7 = vector.load %arg5[%c0_8, %c0_9] : memref<1x128xf32, #tpu.memory_space<vmem>>, vector<1x128xf32>
    %8 = vector.broadcast %7 : vector<1x128xf32> to vector<8x128xf32>
    %9 = arith.addf %6, %8 : vector<8x128xf32>
    %cst_10 = arith.constant 0.000000e+00 : f32
    %10 = vector.broadcast %cst_10 : f32 to vector<8x128xf32>
    %11 = arith.maximumf %9, %10 : vector<8x128xf32>
    %c0_11 = arith.constant 0 : index
    %c0_12 = arith.constant 0 : index
    %12 = vector.load %arg6[%c0_11, %c0_12] : memref<128x128xf32, #tpu.memory_space<vmem>>, vector<128x128xf32>
    %cst_13 = arith.constant dense<0.000000e+00> : vector<8x128xf32>
    %13 = tpu.matmul %11, %12, %cst_13 {dimension_numbers = #tpu.dot_dimension_numbers<[1], [0], [0], [1], [0, 0, 1, 1], [], []>} : vector<8x128xf32>, vector<128x128xf32>, vector<8x128xf32> -> vector<8x128xf32>
    %c0_14 = arith.constant 0 : index
    %c0_15 = arith.constant 0 : index
    %14 = vector.load %arg7[%c0_14, %c0_15] : memref<1x128xf32, #tpu.memory_space<vmem>>, vector<1x128xf32>
    %15 = vector.broadcast %14 : vector<1x128xf32> to vector<8x128xf32>
    %16 = arith.addf %13, %15 : vector<8x128xf32>
    %cst_16 = arith.constant 0.000000e+00 : f32
    %17 = vector.broadcast %cst_16 : f32 to vector<8x128xf32>
    %18 = arith.maximumf %16, %17 : vector<8x128xf32>
    %c0_17 = arith.constant 0 : index
    %c0_18 = arith.constant 0 : index
    %19 = vector.load %arg8[%c0_17, %c0_18] : memref<128x128xf32, #tpu.memory_space<vmem>>, vector<128x128xf32>
    %cst_19 = arith.constant dense<0.000000e+00> : vector<8x128xf32>
    %20 = tpu.matmul %18, %19, %cst_19 {dimension_numbers = #tpu.dot_dimension_numbers<[1], [0], [0], [1], [0, 0, 1, 1], [], []>} : vector<8x128xf32>, vector<128x128xf32>, vector<8x128xf32> -> vector<8x128xf32>
    %c0_20 = arith.constant 0 : index
    %c0_21 = arith.constant 0 : index
    %21 = vector.load %arg9[%c0_20, %c0_21] : memref<1x128xf32, #tpu.memory_space<vmem>>, vector<1x128xf32>
    %22 = vector.broadcast %21 : vector<1x128xf32> to vector<8x128xf32>
    %23 = arith.addf %20, %22 : vector<8x128xf32>
    %c0_22 = arith.constant 0 : index
    %c0_23 = arith.constant 0 : index
    %24 = vector.load %arg10[%c0_22, %c0_23] : memref<8x128xf32, #tpu.memory_space<vmem>>, vector<8x128xf32>
    tpu.vector_store %arg10[%c0_22, %c0_23], %23 {strides = array<i32>} : memref<8x128xf32, #tpu.memory_space<vmem>>, vector<8x128xf32>,
    return
  }
  func.func @transform_0(%arg0: i32) -> (i32, i32) {
    %c0_i32 = arith.constant 0 : i32
    %c0_i32_0 = arith.constant 0 : i32
    return %arg0, %c0_i32 : i32, i32
  }
  func.func @transform_1(%arg0: i32) -> (i32, i32) {
    %c0_i32 = arith.constant 0 : i32
    %c0_i32_0 = arith.constant 0 : i32
    return %arg0, %c0_i32 : i32, i32
  }
  func.func @transform_2(%arg0: i32) -> (i32, i32) {
    %c0_i32 = arith.constant 0 : i32
    %c0_i32_0 = arith.constant 0 : i32
    %c0_i32_1 = arith.constant 0 : i32
    return %c0_i32, %c0_i32_0 : i32, i32
  }
  func.func @transform_3(%arg0: i32) -> (i32, i32) {
    %c0_i32 = arith.constant 0 : i32
    %c0_i32_0 = arith.constant 0 : i32
    %c0_i32_1 = arith.constant 0 : i32
    return %c0_i32, %c0_i32_0 : i32, i32
  }
  func.func @transform_4(%arg0: i32) -> (i32, i32) {
    %c0_i32 = arith.constant 0 : i32
    %c0_i32_0 = arith.constant 0 : i32
    %c0_i32_1 = arith.constant 0 : i32
    return %c0_i32, %c0_i32_0 : i32, i32
  }
  func.func @transform_5(%arg0: i32) -> (i32, i32) {
    %c0_i32 = arith.constant 0 : i32
    %c0_i32_0 = arith.constant 0 : i32
    %c0_i32_1 = arith.constant 0 : i32
    return %c0_i32, %c0_i32_0 : i32, i32
  }
  func.func @transform_6(%arg0: i32) -> (i32, i32) {
    %c0_i32 = arith.constant 0 : i32
    %c0_i32_0 = arith.constant 0 : i32
    %c0_i32_1 = arith.constant 0 : i32
    return %c0_i32, %c0_i32_0 : i32, i32
  }
  func.func @transform_7(%arg0: i32) -> (i32, i32) {
    %c0_i32 = arith.constant 0 : i32
    %c0_i32_0 = arith.constant 0 : i32
    %c0_i32_1 = arith.constant 0 : i32
    return %c0_i32, %c0_i32_0 : i32, i32
  }
  func.func @transform_8(%arg0: i32) -> (i32, i32) {
    %c0_i32 = arith.constant 0 : i32
    %c0_i32_0 = arith.constant 0 : i32
    %c0_i32_1 = arith.constant 0 : i32
    return %c0_i32, %c0_i32_0 : i32, i32
  }
  func.func @transform_9(%arg0: i32) -> (i32, i32) {
    %c0_i32 = arith.constant 0 : i32
    %c0_i32_0 = arith.constant 0 : i32
    return %arg0, %c0_i32 : i32, i32
  }
}

</mosaic_0001>

<llo_original>
// kernel: _critic_pallas.1
$region0: #{_critic_pallas.1}
  #allocation0 [shape = 'u32[]', space=smem, size = 0x4, offset = 0x4, fixed_abs, tag = 'smem constant byte address 0x4 - core index']
  #allocation1 [shape = 'u32[144,128]{1,0:T(1,128)}', space=vmem, size = 0x12000, scoped, tag = 'internal scratch']
  %s0 = inlined_call_operand.vmem [shape: f32[8,16], index: 0, kind: input, shape index: {}]
  %s1 = inlined_call_operand.vmem [shape: f32[8,8], index: 1, kind: input, shape index: {}]
  %s2 = inlined_call_operand.vmem [shape: f32[16,128], index: 2, kind: input, shape index: {}]
  %s3 = inlined_call_operand.vmem [shape: f32[8,128], index: 3, kind: input, shape index: {}]
  %s4 = inlined_call_operand.vmem [shape: f32[1,128], index: 4, kind: input, shape index: {}]
  %s5 = inlined_call_operand.hbm [shape: f32[128,128], index: 5, kind: input, shape index: {}]
  %s6 = inlined_call_operand.vmem [shape: f32[1,128], index: 6, kind: input, shape index: {}]
  %s7 = inlined_call_operand.hbm [shape: f32[128,128], index: 7, kind: input, shape index: {}]
  %s8 = inlined_call_operand.vmem [shape: f32[1,128], index: 8, kind: input, shape index: {}]
  %s9 = inlined_call_operand.vmem [shape: f32[8,128], index: 9, kind: output, shape index: {}]
  %s10 = sld [smem:[#allocation0]]
  $region54: #{_critic_pallas.1} parent=0
    _
  %s12 = ssub.s32 1, %s10
  %s13 = scalar_select 0, %s12, %s10
  $region1: #{_critic_pallas.1} parent=0
    #allocation2 [shape = 'u8[65536]{0}', space=vmem, size = 0x10000, scoped, tag = 'input window, operand 5, single buffered']
    #allocation3 [shape = 's32[1]{0}', space=sflag, size = 0x4, scoped, tag = 'scoped memory for _critic_pallas.1']
    #allocation4 [shape = 'u8[65536]{0}', space=vmem, size = 0x10000, scoped, tag = 'input window, operand 7, single buffered']
    #allocation5 [shape = 's32[1]{0}', space=sflag, size = 0x4, scoped, tag = 'scoped memory for _critic_pallas.1']
    %14 = vsyncpa [#allocation3], 0
    %15 = vsyncpa [#allocation5], 0
    // Predicated region
    $region2: #{_critic_pallas.1} parent=1 // pred_check
      _
    $region3: #{_critic_pallas.1} parent=1 // pred_check_branch
      %17 = sbr.rel (0) target = $region5
    $region4: #{_critic_pallas.1} parent=1 // pred_region
      _
    $region5: #{_critic_pallas.1} parent=1 // pred_fallthru
      _
    // Predicated region
    $region6: #{_critic_pallas.1} parent=1 // pred_check
      _
    $region7: #{_critic_pallas.1} parent=1 // pred_check_branch
      %19 = sbr.rel (0) target = $region9
    $region8: #{_critic_pallas.1} parent=1 // pred_region
      _
    $region9: #{_critic_pallas.1} parent=1 // pred_fallthru
      _
    // Predicated region
    $region10: #{_critic_pallas.1} parent=1 // pred_check
      _
    $region11: #{_critic_pallas.1} parent=1 // pred_check_branch
      %21 = sbr.rel (0) target = $region13
    $region12: #{_critic_pallas.1} parent=1 // pred_region
      _
    $region13: #{_critic_pallas.1} parent=1 // pred_fallthru
      _
    // Predicated region
    $region14: #{_critic_pallas.1} parent=1 // pred_check
      _
    $region15: #{_critic_pallas.1} parent=1 // pred_check_branch
      %23 = sbr.rel (0) target = $region17
    $region16: #{_critic_pallas.1} parent=1 // pred_region
      _
    $region17: #{_critic_pallas.1} parent=1 // pred_fallthru
      _
    // Predicated region
    $region18: #{_critic_pallas.1} parent=1 // pred_check
      _
    $region19: #{_critic_pallas.1} parent=1 // pred_check_branch
      %25 = sbr.rel (0) target = $region21
    $region20: #{_critic_pallas.1} parent=1 // pred_region
      _
    $region21: #{_critic_pallas.1} parent=1 // pred_fallthru
      _
    // Predicated region
    $region22: #{_critic_pallas.1} parent=1 // pred_check
      _
    $region23: #{_critic_pallas.1} parent=1 // pred_check_branch
      %27 = sbr.rel (0) target = $region25
    $region24: #{_critic_pallas.1} parent=1 // pred_region
      %s29 = ssub.s32 2048, 2048
      %30 = vsyncadd [#allocation3], %s29
      %s31 = sshll.u32 [#allocation2], 4
      %s32 = int_to_ptr.vmem [resolvable:$true] %s31
      %37 = dma.hbm_to_vmem [thread:$0]  %s5, 2048, %s32, [#allocation3], 128, 128, 8
    $region25: #{_critic_pallas.1} parent=1 // pred_fallthru
      _
    // Predicated region
    $region26: #{_critic_pallas.1} parent=1 // pred_check
      _
    $region27: #{_critic_pallas.1} parent=1 // pred_check_branch
      %39 = sbr.rel (0) target = $region29
    $region28: #{_critic_pallas.1} parent=1 // pred_region
      _
    $region29: #{_critic_pallas.1} parent=1 // pred_fallthru
      _
    // Predicated region
    $region30: #{_critic_pallas.1} parent=1 // pred_check
      _
    $region31: #{_critic_pallas.1} parent=1 // pred_check_branch
      %41 = sbr.rel (0) target = $region33
    $region32: #{_critic_pallas.1} parent=1 // pred_region
      %s43 = ssub.s32 2048, 2048
      %44 = vsyncadd [#allocation5], %s43
      %s45 = sshll.u32 [#allocation4], 4
      %s46 = int_to_ptr.vmem [resolvable:$true] %s45
      %51 = dma.hbm_to_vmem [thread:$0]  %s7, 2048, %s46, [#allocation5], 128, 128, 8
    $region33: #{_critic_pallas.1} parent=1 // pred_fallthru
      _
    // Predicated region
    $region34: #{_critic_pallas.1} parent=1 // pred_check
      _
    $region35: #{_critic_pallas.1} parent=1 // pred_check_branch
      %53 = sbr.rel (0) target = $region37
    $region36: #{_critic_pallas.1} parent=1 // pred_region
      _
    $region37: #{_critic_pallas.1} parent=1 // pred_fallthru
      _
    // Predicated region
    $region38: #{_critic_pallas.1} parent=1 // pred_check
      _
    $region39: #{_critic_pallas.1} parent=1 // pred_check_branch
      %55 = sbr.rel (0) target = $region41
    $region40: #{_critic_pallas.1} parent=1 // pred_region
      %56 = dma.done [#allocation3], 2048
    $region41: #{_critic_pallas.1} parent=1 // pred_fallthru
      _
    // Predicated region
    $region42: #{_critic_pallas.1} parent=1 // pred_check
      _
    $region43: #{_critic_pallas.1} parent=1 // pred_check_branch
      %58 = sbr.rel (0) target = $region45
    $region44: #{_critic_pallas.1} parent=1 // pred_region
      %59 = dma.done [#allocation5], 2048
    $region45: #{_critic_pallas.1} parent=1 // pred_fallthru
      _
    %v60 = vld [vmem:[%s0] sm:$0xff]
    %v61 = vld [vmem:[%s2] sm:$0xff]
    %v62 = vld [vmem:[%s2 + $0x8] sm:$0xff]
    %v63 = vld [vmem:[%s1] sm:$0xff]
    %v64 = vld [vmem:[%s3] sm:$0xff]
    %vm65 = vcmask 64512
    %v67 = vsel %vm65, %v63, 0
    %69 = vmatprep.subr.mxu0 0.0
    %70 = vmatpush1.msra.mxu0 %v64
    %71 = vmatprep.subr.mxu0 0.0
    %72 = vmatpush1.msra.mxu0 0.0
    %73 = vmatprep.subr.mxu0 0.0
    %74 = vmatpush1.msra.mxu0 0.0
    %75 = vmatprep.subr.mxu0 0.0
    %76 = vmatpush1.msra.mxu0 0.0
    %77 = vmatprep.subr.mxu0 0.0
    %78 = vmatpush1.msra.mxu0 0.0
    %79 = vmatprep.subr.mxu0 0.0
    %80 = vmatpush1.msra.mxu0 0.0
    %81 = vmatprep.subr.mxu0 0.0
    %82 = vmatpush1.msra.mxu0 0.0
    %83 = vmatprep.subr.mxu0 0.0
    %84 = vmatpush1.msra.mxu0 0.0
    %85 = vmatprep.subr.mxu0 0.0
    %86 = vmatpush1.msra.mxu0 0.0
    %87 = vmatprep.subr.mxu0 0.0
    %88 = vmatpush1.msra.mxu0 0.0
    %89 = vmatprep.subr.mxu0 0.0
    %90 = vmatpush1.msra.mxu0 0.0
    %91 = vmatprep.subr.mxu0 0.0
    %92 = vmatpush1.msra.mxu0 0.0
    %93 = vmatprep.subr.mxu0 0.0
    %94 = vmatpush1.msra.mxu0 0.0
    %95 = vmatprep.subr.mxu0 0.0
    %96 = vmatpush1.msra.mxu0 0.0
    %97 = vmatprep.subr.mxu0 0.0
    %98 = vmatpush1.msra.mxu0 0.0
    %99 = vmatprep.subr.mxu0 0.0
    %100 = vmatpush1.msra.mxu0 0.0
    %101 = vmatprep.subr.mxu0 0.0
    %102 = vmatpush1.msra.mxu0 0.0
    %103 = vmatprep.subr.mxu0 0.0
    %104 = vmatpush1.msra.mxu0 0.0
    %105 = vmatprep.subr.mxu0 0.0
    %106 = vmatpush1.msra.mxu0 0.0
    %107 = vmatprep.subr.mxu0 0.0
    %108 = vmatpush1.msra.mxu0 0.0
    %109 = vmatprep.subr.mxu0 0.0
    %110 = vmatpush1.msra.mxu0 0.0
    %111 = vmatprep.subr.mxu0 0.0
    %112 = vmatpush1.msra.mxu0 0.0
    %113 = vmatprep.subr.mxu0 0.0
    %114 = vmatpush1.msra.mxu0 0.0
    %115 = vmatprep.subr.mxu0 0.0
    %116 = vmatpush1.msra.mxu0 0.0
    %117 = vmatprep.subr.mxu0 0.0
    %118 = vmatpush1.msra.mxu0 0.0
    %119 = vmatprep.subr.mxu0 0.0
    %120 = vmatpush1.msra.mxu0 0.0
    %121 = vmatprep.subr.mxu0 0.0
    %122 = vmatpush1.msra.mxu0 0.0
    %123 = vmatprep.subr.mxu0 0.0
    %124 = vmatpush1.msra.mxu0 0.0
    %125 = vmatprep.subr.mxu0 0.0
    %126 = vmatpush1.msra.mxu0 0.0
    %127 = vmatprep.subr.mxu0 0.0
    %128 = vmatpush1.msra.mxu0 0.0
    %129 = vmatprep.subr.mxu0 0.0
    %130 = vmatpush1.msra.mxu0 0.0
    %131 = vmatprep.subr.mxu0 0.0
    %132 = vmatpush1.msra.mxu0 0.0
    %133 = vmatprep.mubr.f32.mxu0 0.0
    %134 = vmatmul.mubr.f32.gmra.mrb[0].mxu0 %v67
    %v135 = vpop.f32.mrb[0].mxu0
    %v136 = vadd.f32 0.0, %v135
    %v137 = vpop.f32.mrb[0].mxu0
    %138 = vdwg.mxu0
    %vm139 = vcmask 130048
    %v141 = vsel %vm139, %v60, 0
    %143 = vmatprep.subr.mxu0 0.0
    %144 = vmatpush1.msra.mxu0 %v61
    %145 = vmatprep.subr.mxu0 0.0
    %146 = vmatpush1.msra.mxu0 %v62
    %147 = vmatprep.subr.mxu0 0.0
    %148 = vmatpush1.msra.mxu0 0.0
    %149 = vmatprep.subr.mxu0 0.0
    %150 = vmatpush1.msra.mxu0 0.0
    %151 = vmatprep.subr.mxu0 0.0
    %152 = vmatpush1.msra.mxu0 0.0
    %153 = vmatprep.subr.mxu0 0.0
    %154 = vmatpush1.msra.mxu0 0.0
    %155 = vmatprep.subr.mxu0 0.0
    %156 = vmatpush1.msra.mxu0 0.0
    %157 = vmatprep.subr.mxu0 0.0
    %158 = vmatpush1.msra.mxu0 0.0
    %159 = vmatprep.subr.mxu0 0.0
    %160 = vmatpush1.msra.mxu0 0.0
    %161 = vmatprep.subr.mxu0 0.0
    %162 = vmatpush1.msra.mxu0 0.0
    %163 = vmatprep.subr.mxu0 0.0
    %164 = vmatpush1.msra.mxu0 0.0
    %165 = vmatprep.subr.mxu0 0.0
    %166 = vmatpush1.msra.mxu0 0.0
    %167 = vmatprep.subr.mxu0 0.0
    %168 = vmatpush1.msra.mxu0 0.0
    %169 = vmatprep.subr.mxu0 0.0
    %170 = vmatpush1.msra.mxu0 0.0
    %171 = vmatprep.subr.mxu0 0.0
    %172 = vmatpush1.msra.mxu0 0.0
    %173 = vmatprep.subr.mxu0 0.0
    %174 = vmatpush1.msra.mxu0 0.0
    %175 = vmatprep.subr.mxu0 0.0
    %176 = vmatpush1.msra.mxu0 0.0
    %177 = vmatprep.subr.mxu0 0.0
    %178 = vmatpush1.msra.mxu0 0.0
    %179 = vmatprep.subr.mxu0 0.0
    %180 = vmatpush1.msra.mxu0 0.0
    %181 = vmatprep.subr.mxu0 0.0
    %182 = vmatpush1.msra.mxu0 0.0
    %183 = vmatprep.subr.mxu0 0.0
    %184 = vmatpush1.msra.mxu0 0.0
    %185 = vmatprep.subr.mxu0 0.0
    %186 = vmatpush1.msra.mxu0 0.0
    %187 = vmatprep.subr.mxu0 0.0
    %188 = vmatpush1.msra.mxu0 0.0
    %189 = vmatprep.subr.mxu0 0.0
    %190 = vmatpush1.msra.mxu0 0.0
    %191 = vmatprep.subr.mxu0 0.0
    %192 = vmatpush1.msra.mxu0 0.0
    %193 = vmatprep.subr.mxu0 0.0
    %194 = vmatpush1.msra.mxu0 0.0
    %195 = vmatprep.subr.mxu0 0.0
    %196 = vmatpush1.msra.mxu0 0.0
    %197 = vmatprep.subr.mxu0 0.0
    %198 = vmatpush1.msra.mxu0 0.0
    %199 = vmatprep.subr.mxu0 0.0
    %200 = vmatpush1.msra.mxu0 0.0
    %201 = vmatprep.subr.mxu0 0.0
    %202 = vmatpush1.msra.mxu0 0.0
    %203 = vmatprep.subr.mxu0 0.0
    %204 = vmatpush1.msra.mxu0 0.0
    %205 = vmatprep.subr.mxu0 0.0
    %206 = vmatpush1.msra.mxu0 0.0
    %207 = vmatprep.mubr.f32.mxu0 0.0
    %208 = vmatmul.mubr.f32.gmra.mrb[0].mxu0 %v141
    %v209 = vpop.f32.mrb[0].mxu0
    %v210 = vadd.f32 %v136, %v209
    %v211 = vpop.f32.mrb[0].mxu0
    %212 = vdwg.mxu0
    %v213 = vld [vmem:[%s4] sm:$0x1]
    %v215 = vlaneseq
    %v216 = vshrl.u32 %v215, 7
    %v217 = vsub.s32 0, %v216
    %v218 = vrot.slane %v213, %v217
    %v220 = vadd.f32 %v210, %v218
    %v221 = vmax.f32 %v220, 0.0
    %v222 = vld [vmem:[#allocation2] sm:$0xff]
    %v223 = vld [vmem:[#allocation2 + $0x8] sm:$0xff]
    %v224 = vld [vmem:[#allocation2 + $0x10] sm:$0xff]
    %v225 = vld [vmem:[#allocation2 + $0x18] sm:$0xff]
    %v226 = vld [vmem:[#allocation2 + $0x20] sm:$0xff]
    %v227 = vld [vmem:[#allocation2 + $0x28] sm:$0xff]
    %v228 = vld [vmem:[#allocation2 + $0x30] sm:$0xff]
    %v229 = vld [vmem:[#allocation2 + $0x38] sm:$0xff]
    %v230 = vld [vmem:[#allocation2 + $0x40] sm:$0xff]
    %v231 = vld [vmem:[#allocation2 + $0x48] sm:$0xff]
    %v232 = vld [vmem:[#allocation2 + $0x50] sm:$0xff]
    %v233 = vld [vmem:[#allocation2 + $0x58] sm:$0xff]
    %v234 = vld [vmem:[#allocation2 + $0x60] sm:$0xff]
    %v235 = vld [vmem:[#allocation2 + $0x68] sm:$0xff]
    %v236 = vld [vmem:[#allocation2 + $0x70] sm:$0xff]
    %v237 = vld [vmem:[#allocation2 + $0x78] sm:$0xff]
    %v238 = vld [vmem:[%s6] sm:$0x1]
    %v240 = vlaneseq
    %v241 = vshrl.u32 %v240, 7
    %v242 = vsub.s32 0, %v241
    %v243 = vrot.slane %v238, %v242
    %245 = vmatprep.subr.mxu0 0.0
    %246 = vmatpush1.msra.mxu0 %v222
    %247 = vmatprep.subr.mxu0 0.0
    %248 = vmatpush1.msra.mxu0 %v223
    %249 = vmatprep.subr.mxu0 0.0
    %250 = vmatpush1.msra.mxu0 %v224
    %251 = vmatprep.subr.mxu0 0.0
    %252 = vmatpush1.msra.mxu0 %v225
    %253 = vmatprep.subr.mxu0 0.0
    %254 = vmatpush1.msra.mxu0 %v226
    %255 = vmatprep.subr.mxu0 0.0
    %256 = vmatpush1.msra.mxu0 %v227
    %257 = vmatprep.subr.mxu0 0.0
    %258 = vmatpush1.msra.mxu0 %v228
    %259 = vmatprep.subr.mxu0 0.0
    %260 = vmatpush1.msra.mxu0 %v229
    %261 = vmatprep.subr.mxu0 0.0
    %262 = vmatpush1.msra.mxu0 %v230
    %263 = vmatprep.subr.mxu0 0.0
    %264 = vmatpush1.msra.mxu0 %v231
    %265 = vmatprep.subr.mxu0 0.0
    %266 = vmatpush1.msra.mxu0 %v232
    %267 = vmatprep.subr.mxu0 0.0
    %268 = vmatpush1.msra.mxu0 %v233
    %269 = vmatprep.subr.mxu0 0.0
    %270 = vmatpush1.msra.mxu0 %v234
    %271 = vmatprep.subr.mxu0 0.0
    %272 = vmatpush1.msra.mxu0 %v235
    %273 = vmatprep.subr.mxu0 0.0
    %274 = vmatpush1.msra.mxu0 %v236
    %275 = vmatprep.subr.mxu0 0.0
    %276 = vmatpush1.msra.mxu0 %v237
    %277 = vmatprep.subr.mxu0 0.0
    %278 = vmatpush1.msra.mxu0 0.0
    %279 = vmatprep.subr.mxu0 0.0
    %280 = vmatpush1.msra.mxu0 0.0
    %281 = vmatprep.subr.mxu0 0.0
    %282 = vmatpush1.msra.mxu0 0.0
    %283 = vmatprep.subr.mxu0 0.0
    %284 = vmatpush1.msra.mxu0 0.0
    %285 = vmatprep.subr.mxu0 0.0
    %286 = vmatpush1.msra.mxu0 0.0
    %287 = vmatprep.subr.mxu0 0.0
    %288 = vmatpush1.msra.mxu0 0.0
    %289 = vmatprep.subr.mxu0 0.0
    %290 = vmatpush1.msra.mxu0 0.0
    %291 = vmatprep.subr.mxu0 0.0
    %292 = vmatpush1.msra.mxu0 0.0
    %293 = vmatprep.subr.mxu0 0.0
    %294 = vmatpush1.msra.mxu0 0.0
    %295 = vmatprep.subr.mxu0 0.0
    %296 = vmatpush1.msra.mxu0 0.0
    %297 = vmatprep.subr.mxu0 0.0
    %298 = vmatpush1.msra.mxu0 0.0
    %299 = vmatprep.subr.mxu0 0.0
    %300 = vmatpush1.msra.mxu0 0.0
    %301 = vmatprep.subr.mxu0 0.0
    %302 = vmatpush1.msra.mxu0 0.0
    %303 = vmatprep.subr.mxu0 0.0
    %304 = vmatpush1.msra.mxu0 0.0
    %305 = vmatprep.subr.mxu0 0.0
    %306 = vmatpush1.msra.mxu0 0.0
    %307 = vmatprep.subr.mxu0 0.0
    %308 = vmatpush1.msra.mxu0 0.0
    %309 = vmatprep.mubr.f32.mxu0 0.0
    %310 = vmatmul.mubr.f32.gmra.mrb[0].mxu0 %v221
    %v311 = vpop.f32.mrb[0].mxu0
    %v312 = vadd.f32 %v243, %v311
    %v313 = vpop.f32.mrb[0].mxu0
    %314 = vdwg.mxu0
    %v315 = vmax.f32 %v312, 0.0
    %v316 = vld [vmem:[#allocation4] sm:$0xff]
    %v317 = vld [vmem:[#allocation4 + $0x8] sm:$0xff]
    %v318 = vld [vmem:[#allocation4 + $0x10] sm:$0xff]
    %v319 = vld [vmem:[#allocation4 + $0x18] sm:$0xff]
    %v320 = vld [vmem:[#allocation4 + $0x20] sm:$0xff]
    %v321 = vld [vmem:[#allocation4 + $0x28] sm:$0xff]
    %v322 = vld [vmem:[#allocation4 + $0x30] sm:$0xff]
    %v323 = vld [vmem:[#allocation4 + $0x38] sm:$0xff]
    %v324 = vld [vmem:[#allocation4 + $0x40] sm:$0xff]
    %v325 = vld [vmem:[#allocation4 + $0x48] sm:$0xff]
    %v326 = vld [vmem:[#allocation4 + $0x50] sm:$0xff]
    %v327 = vld [vmem:[#allocation4 + $0x58] sm:$0xff]
    %v328 = vld [vmem:[#allocation4 + $0x60] sm:$0xff]
    %v329 = vld [vmem:[#allocation4 + $0x68] sm:$0xff]
    %v330 = vld [vmem:[#allocation4 + $0x70] sm:$0xff]
    %v331 = vld [vmem:[#allocation4 + $0x78] sm:$0xff]
    %v332 = vld [vmem:[%s8] sm:$0x1]
    %v334 = vlaneseq
    %v335 = vshrl.u32 %v334, 7
    %v336 = vsub.s32 0, %v335
    %v337 = vrot.slane %v332, %v336
    %339 = vmatprep.subr.mxu0 0.0
    %340 = vmatpush1.msra.mxu0 %v316
    %341 = vmatprep.subr.mxu0 0.0
    %342 = vmatpush1.msra.mxu0 %v317
    %343 = vmatprep.subr.mxu0 0.0
    %344 = vmatpush1.msra.mxu0 %v318
    %345 = vmatprep.subr.mxu0 0.0
    %346 = vmatpush1.msra.mxu0 %v319
    %347 = vmatprep.subr.mxu0 0.0
    %348 = vmatpush1.msra.mxu0 %v320
    %349 = vmatprep.subr.mxu0 0.0
    %350 = vmatpush1.msra.mxu0 %v321
    %351 = vmatprep.subr.mxu0 0.0
    %352 = vmatpush1.msra.mxu0 %v322
    %353 = vmatprep.subr.mxu0 0.0
    %354 = vmatpush1.msra.mxu0 %v323
    %355 = vmatprep.subr.mxu0 0.0
    %356 = vmatpush1.msra.mxu0 %v324
    %357 = vmatprep.subr.mxu0 0.0
    %358 = vmatpush1.msra.mxu0 %v325
    %359 = vmatprep.subr.mxu0 0.0
    %360 = vmatpush1.msra.mxu0 %v326
    %361 = vmatprep.subr.mxu0 0.0
    %362 = vmatpush1.msra.mxu0 %v327
    %363 = vmatprep.subr.mxu0 0.0
    %364 = vmatpush1.msra.mxu0 %v328
    %365 = vmatprep.subr.mxu0 0.0
    %366 = vmatpush1.msra.mxu0 %v329
    %367 = vmatprep.subr.mxu0 0.0
    %368 = vmatpush1.msra.mxu0 %v330
    %369 = vmatprep.subr.mxu0 0.0
    %370 = vmatpush1.msra.mxu0 %v331
    %371 = vmatprep.subr.mxu0 0.0
    %372 = vmatpush1.msra.mxu0 0.0
    %373 = vmatprep.subr.mxu0 0.0
    %374 = vmatpush1.msra.mxu0 0.0
    %375 = vmatprep.subr.mxu0 0.0
    %376 = vmatpush1.msra.mxu0 0.0
    %377 = vmatprep.subr.mxu0 0.0
    %378 = vmatpush1.msra.mxu0 0.0
    %379 = vmatprep.subr.mxu0 0.0
    %380 = vmatpush1.msra.mxu0 0.0
    %381 = vmatprep.subr.mxu0 0.0
    %382 = vmatpush1.msra.mxu0 0.0
    %383 = vmatprep.subr.mxu0 0.0
    %384 = vmatpush1.msra.mxu0 0.0
    %385 = vmatprep.subr.mxu0 0.0
    %386 = vmatpush1.msra.mxu0 0.0
    %387 = vmatprep.subr.mxu0 0.0
    %388 = vmatpush1.msra.mxu0 0.0
    %389 = vmatprep.subr.mxu0 0.0
    %390 = vmatpush1.msra.mxu0 0.0
    %391 = vmatprep.subr.mxu0 0.0
    %392 = vmatpush1.msra.mxu0 0.0
    %393 = vmatprep.subr.mxu0 0.0
    %394 = vmatpush1.msra.mxu0 0.0
    %395 = vmatprep.subr.mxu0 0.0
    %396 = vmatpush1.msra.mxu0 0.0
    %397 = vmatprep.subr.mxu0 0.0
    %398 = vmatpush1.msra.mxu0 0.0
    %399 = vmatprep.subr.mxu0 0.0
    %400 = vmatpush1.msra.mxu0 0.0
    %401 = vmatprep.subr.mxu0 0.0
    %402 = vmatpush1.msra.mxu0 0.0
    %403 = vmatprep.mubr.f32.mxu0 0.0
    %404 = vmatmul.mubr.f32.gmra.mrb[0].mxu0 %v315
    %v405 = vpop.f32.mrb[0].mxu0
    %v406 = vadd.f32 %v337, %v405
    %v407 = vpop.f32.mrb[0].mxu0
    %408 = vdwg.mxu0
    %409 = vst [vmem:[%s9] sm:$0xff] %v406
    // Predicated region
    $region46: #{_critic_pallas.1} parent=1 // pred_check
      _
    $region47: #{_critic_pallas.1} parent=1 // pred_check_branch
      %411 = sbr.rel (0) target = $region49
    $region48: #{_critic_pallas.1} parent=1 // pred_region
      _
    $region49: #{_critic_pallas.1} parent=1 // pred_fallthru
      _
    // Predicated region
    $region50: #{_critic_pallas.1} parent=1 // pred_check
      _
    $region51: #{_critic_pallas.1} parent=1 // pred_check_branch
      %413 = sbr.rel (0) target = $region53
    $region52: #{_critic_pallas.1} parent=1 // pred_region
      _
    $region53: #{_critic_pallas.1} parent=1 // pred_fallthru
      _
    %414 = vsyncpa [#allocation3], 1
    %415 = vsyncpa [#allocation5], 1

</llo_original>
